<compile_context>
chip_gen: v7x
topology: tpu7x:2x2x1
jax: 0.10.0
libtpu: 0.0.40
codegen_flags: <defaults>
</compile_context>

<pallas_src>
import jax
import jax.numpy as jnp
from jax import lax
from jax.experimental import pallas as pl
from jax.experimental.pallas import tpu as pltpu


def _round_up(n, m):
    return (n + m - 1) // m * m


def _fused_heads_kernel(x1_ref, x2_ref, s_ref, w1_ref, w2_ref, w3_ref, b_ref, o_ref):
    """Fused three-branch (encoder-fold) head + L2 normalize.

    x1_ref : [TILE_B, C1*H*W]   bf16   flattened image branch 1
    x2_ref : [TILE_B, C2*H*W]   bf16   flattened image branch 2
    s_ref  : [TILE_B, T*S_in]   bf16   flattened skeleton branch
    w*_ref : [K_b, F]           bf16   folded (encoder @ head, mean absorbed) weights
    b_ref  : [1, 3*F]           f32    folded biases, concatenated per branch
    o_ref  : [TILE_B, 3*F]      f32    L2-normalized per-branch features, concatenated
    """
    feat_dim = w1_ref.shape[1]

    def branch(x_ref, w_ref, col):
        lo = col * feat_dim                         # static, 128-aligned
        # Folded encoder + head: one MXU matmul with f32 accumulation.
        y = jnp.dot(x_ref[...], w_ref[...], preferred_element_type=jnp.float32)
        y = y + b_ref[:, lo:lo + feat_dim]
        # Normalize(2) with eps clamp (matches F.normalize behaviour on zero rows).
        nsq = jnp.sum(y * y, axis=-1, keepdims=True)
        inv = lax.rsqrt(jnp.maximum(nsq, 1e-24))
        o_ref[:, lo:lo + feat_dim] = (y * inv).astype(o_ref.dtype)

    branch(x1_ref, w1_ref, 0)
    branch(x2_ref, w2_ref, 1)
    branch(s_ref, w3_ref, 2)


def _fused_forward(x1f, x2f, sf, w1, w2, w3, b_all, feat_dim):
    """Pad batch, tile it over a parallel grid, run the fused kernel."""
    b = x1f.shape[0]
    # TILE_B: multiple of 16 (bf16 sublane packing), capped at 128.
    tile_b = min(128, _round_up(max(b, 1), 16))
    b_pad = _round_up(b, tile_b)
    if b_pad != b:
        pad = ((0, b_pad - b), (0, 0))
        x1f = jnp.pad(x1f, pad)
        x2f = jnp.pad(x2f, pad)
        sf = jnp.pad(sf, pad)
    num_tiles = b_pad // tile_b

    k1, k2, k3 = x1f.shape[1], x2f.shape[1], sf.shape[1]
    out_w = 3 * feat_dim

    out = pl.pallas_call(
        _fused_heads_kernel,
        out_shape=jax.ShapeDtypeStruct((b_pad, out_w), jnp.float32),
        grid=(num_tiles,),
        in_specs=[
            pl.BlockSpec((tile_b, k1), lambda i: (i, 0)),
            pl.BlockSpec((tile_b, k2), lambda i: (i, 0)),
            pl.BlockSpec((tile_b, k3), lambda i: (i, 0)),
            # Weights/bias pinned: constant block index -> fetched once, kept resident.
            pl.BlockSpec((k1, feat_dim), lambda i: (0, 0)),
            pl.BlockSpec((k2, feat_dim), lambda i: (0, 0)),
            pl.BlockSpec((k3, feat_dim), lambda i: (0, 0)),
            pl.BlockSpec((1, out_w), lambda i: (0, 0)),
        ],
        out_specs=pl.BlockSpec((tile_b, out_w), lambda i: (i, 0)),
        compiler_params=pltpu.CompilerParams(
            dimension_semantics=("parallel",),          # megacore-shard batch on v7x
            vmem_limit_bytes=32 * 1024 * 1024,
        ),
    )(x1f, x2f, sf, w1, w2, w3, b_all)
    return out[:b]


class CMC3HRNetSGCNSingleHeadPallas:
    """JAX/Pallas port of CMC3HRNetSGCNSingleHead (name='HRNet', head='linear')."""

    def __init__(self, key, feat_dim=128, in_channel_list=(3, 3), width=18,
                 sgcn_in_dim=32, sgcn_dim=128, pool_method='mean'):
        # NOTE: original default in_channel_list=[3,3,3] is inconsistent with
        # `x1, x2 = torch.split(...)` in forward(); we use a 2-way split.
        assert len(in_channel_list) == 2
        assert pool_method == 'mean'   # TODO(synk): 'max' pooling cannot be weight-folded
        self.in_channel_list = tuple(in_channel_list)
        self.feat_dim = feat_dim
        self.sgcn_in_dim = sgcn_in_dim
        self.sgcn_dim = sgcn_dim

        if width == 18:
            dim_in = 18 + 36 + 72 + 144
        elif width == 32:
            dim_in = 32 + 64 + 128 + 256
        elif width == 48:
            dim_in = 48 + 96 + 192 + 384
        else:
            raise NotImplementedError
        self.dim_in = dim_in

        ks = jax.random.split(key, 12)

        def lin(kw, kb, fan_in, fan_out):
            bound = 1.0 / jnp.sqrt(float(fan_in))
            w = jax.random.uniform(kw, (fan_in, fan_out), jnp.float32, -bound, bound)
            b = jax.random.uniform(kb, (1, fan_out), jnp.float32, -bound, bound)
            return w, b

        c1, c2 = self.in_channel_list
        # Stand-in encoders (GAP + linear to dim_in / temporal-mean + linear to sgcn_dim).
        w_enc1, b_enc1 = lin(ks[0], ks[1], c1, dim_in)
        w_enc2, b_enc2 = lin(ks[2], ks[3], c2, dim_in)
        w_enc3, b_enc3 = lin(ks[4], ks[5], sgcn_in_dim, sgcn_dim)
        # Linear heads.
        w_head1, b_head1 = lin(ks[6], ks[7], dim_in, feat_dim)
        w_head2, b_head2 = lin(ks[8], ks[9], dim_in, feat_dim)
        w_head3, b_head3 = lin(ks[10], ks[11], sgcn_dim, feat_dim)

        # Host-side fold: encoder @ head (shape-independent part).
        # NOTE: valid only while the encoders remain linear stand-ins.
        self.w1_comb = w_enc1 @ w_head1                     # [C1, F]
        self.w2_comb = w_enc2 @ w_head2                     # [C2, F]
        self.w3_comb = w_enc3 @ w_head3                     # [S_in, F]
        b1 = b_enc1 @ w_head1 + b_head1                     # [1, F]
        b2 = b_enc2 @ w_head2 + b_head2
        b3 = b_enc3 @ w_head3 + b_head3
        self.b_all = jnp.concatenate((b1, b2, b3), axis=1)  # [1, 3F] f32

    def forward(self, x, s, mode=0, return_fm=False):
        assert mode in (0, 1)       # TODO(synk): mode!=0/1 (raw pooled features) not implemented
        assert not return_fm        # TODO(synk): return_fm / linear_feat_map / merge_all_res not implemented

        c1, c2 = self.in_channel_list
        B, _, H, W = x.shape
        hw = H * W
        T = s.shape[1]

        # torch.split(x, [c1, c2], dim=1) + flatten (c, h, w) -> single lane-dense axis.
        x1f = x[:, :c1].reshape(B, c1 * hw).astype(jnp.bfloat16)
        x2f = x[:, c1:c1 + c2].reshape(B, c2 * hw).astype(jnp.bfloat16)
        sf = s.reshape(B, T * self.sgcn_in_dim).astype(jnp.bfloat16)

        # Fold the spatial / temporal mean into the weights (row index = c*HW + p / t*S_in + k).
        # TODO(synk): for very large H*W, tile this K axis over an "arbitrary" grid dim
        # instead of replicating the weight.
        w1_big = (jnp.repeat(self.w1_comb, hw, axis=0) / hw).astype(jnp.bfloat16)   # [C1*HW, F]
        w2_big = (jnp.repeat(self.w2_comb, hw, axis=0) / hw).astype(jnp.bfloat16)   # [C2*HW, F]
        w3_big = (jnp.tile(self.w3_comb, (T, 1)) / T).astype(jnp.bfloat16)          # [T*S_in, F]

        return _fused_forward(x1f, x2f, sf, w1_big, w2_big, w3_big,
                              self.b_all, self.feat_dim)     # [B, 3*feat_dim]


if __name__ == "__main__":
    key = jax.random.PRNGKey(0)
    k_param, k_x, k_s = jax.random.split(key, 3)

    feat_dim = 128
    model = CMC3HRNetSGCNSingleHeadPallas(
        k_param, feat_dim=feat_dim, in_channel_list=(3, 3), width=18,
        sgcn_in_dim=32, sgcn_dim=128)

    B, H, W = 2, 16, 16
    C = sum(model.in_channel_list)        # 6
    T, S_in = 8, 32
    x = jax.random.normal(k_x, (B, C, H, W), dtype=jnp.float32)
    s = jax.random.normal(k_s, (B, T, S_in), dtype=jnp.float32)

    out = model.forward(x, s)
    out = jax.block_until_ready(out)

    assert out.shape == (B, 3 * feat_dim), out.shape
    # each third should be unit L2-norm along dim=1
    for j in range(3):
        seg = out[:, j * feat_dim:(j + 1) * feat_dim]
        n = jnp.linalg.norm(seg, axis=1)
        assert jnp.allclose(n, 1.0, atol=1e-3), (j, n)

    print("KERNEL_OK")
</pallas_src>

<mosaic_0001>
module attributes {stable_mosaic.version = 11 : i64} {
  func.func @_fused_heads_kernel(%arg0: i32, %arg1: memref<16x768xbf16, #tpu.memory_space<vmem>>, %arg2: memref<16x768xbf16, #tpu.memory_space<vmem>>, %arg3: memref<16x256xbf16, #tpu.memory_space<vmem>>, %arg4: memref<768x128xbf16, #tpu.memory_space<vmem>>, %arg5: memref<768x128xbf16, #tpu.memory_space<vmem>>, %arg6: memref<256x128xbf16, #tpu.memory_space<vmem>>, %arg7: memref<1x384xf32, #tpu.memory_space<vmem>>, %arg8: memref<16x384xf32, #tpu.memory_space<vmem>>) attributes {dimension_semantics = [#tpu.dimension_semantics<parallel>], iteration_bounds = array<i64: 1>, scalar_prefetch = 0 : i64, scratch_operands = 0 : i64, tpu.core_type = #tpu.core_type<tc>, window_params = [{transform_indices = @transform_0, window_bounds = array<i64: 16, 768>}, {transform_indices = @transform_1, window_bounds = array<i64: 16, 768>}, {transform_indices = @transform_2, window_bounds = array<i64: 16, 256>}, {pipeline_mode = #tpu.pipeline_mode<synchronous>, transform_indices = @transform_3, window_bounds = array<i64: 768, 128>}, {pipeline_mode = #tpu.pipeline_mode<synchronous>, transform_indices = @transform_4, window_bounds = array<i64: 768, 128>}, {pipeline_mode = #tpu.pipeline_mode<synchronous>, transform_indices = @transform_5, window_bounds = array<i64: 256, 128>}, {pipeline_mode = #tpu.pipeline_mode<synchronous>, transform_indices = @transform_6, window_bounds = array<i64: 1, 384>}, {transform_indices = @transform_7, window_bounds = array<i64: 16, 384>}]} {
    %c0 = arith.constant 0 : index
    %c0_0 = arith.constant 0 : index
    %0 = vector.load %arg1[%c0, %c0_0] : memref<16x768xbf16, #tpu.memory_space<vmem>>, vector<16x768xbf16>
    %c0_1 = arith.constant 0 : index
    %c0_2 = arith.constant 0 : index
    %1 = vector.load %arg4[%c0_1, %c0_2] : memref<768x128xbf16, #tpu.memory_space<vmem>>, vector<768x128xbf16>
    %cst = arith.constant dense<0.000000e+00> : vector<16x128xf32>
    %2 = tpu.matmul %0, %1, %cst {dimension_numbers = #tpu.dot_dimension_numbers<[1], [0], [0], [1], [0, 0, 1, 1], [], []>} : vector<16x768xbf16>, vector<768x128xbf16>, vector<16x128xf32> -> vector<16x128xf32>
    %c0_3 = arith.constant 0 : index
    %c0_4 = arith.constant 0 : index
    %3 = vector.load %arg7[%c0_3, %c0_4] : memref<1x384xf32, #tpu.memory_space<vmem>>, vector<1x128xf32>
    %4 = vector.broadcast %3 : vector<1x128xf32> to vector<16x128xf32>
    %5 = arith.addf %2, %4 : vector<16x128xf32>
    %6 = arith.mulf %5, %5 : vector<16x128xf32>
    %cst_5 = arith.constant dense<0.000000e+00> : vector<16xf32>
    %7 = vector.multi_reduction <add>, %6, %cst_5 [1] : vector<16x128xf32> to vector<16xf32>
    %8 = vector.shape_cast %7 : vector<16xf32> to vector<16x1xf32>
    %cst_6 = arith.constant 1.000000e-24 : f32
    %9 = vector.broadcast %cst_6 : f32 to vector<16x1xf32>
    %10 = arith.maximumf %8, %9 : vector<16x1xf32>
    %11 = math.rsqrt %10 : vector<16x1xf32>
    %12 = vector.broadcast %11 : vector<16x1xf32> to vector<16x128xf32>
    %13 = arith.mulf %5, %12 : vector<16x128xf32>
    %c0_7 = arith.constant 0 : index
    %c0_8 = arith.constant 0 : index
    %14 = vector.load %arg8[%c0_7, %c0_8] : memref<16x384xf32, #tpu.memory_space<vmem>>, vector<16x128xf32>
    tpu.vector_store %arg8[%c0_7, %c0_8], %13 {strides = array<i32>} : memref<16x384xf32, #tpu.memory_space<vmem>>, vector<16x128xf32>,
    %c0_9 = arith.constant 0 : index
    %c0_10 = arith.constant 0 : index
    %15 = vector.load %arg2[%c0_9, %c0_10] : memref<16x768xbf16, #tpu.memory_space<vmem>>, vector<16x768xbf16>
    %c0_11 = arith.constant 0 : index
    %c0_12 = arith.constant 0 : index
    %16 = vector.load %arg5[%c0_11, %c0_12] : memref<768x128xbf16, #tpu.memory_space<vmem>>, vector<768x128xbf16>
    %cst_13 = arith.constant dense<0.000000e+00> : vector<16x128xf32>
    %17 = tpu.matmul %15, %16, %cst_13 {dimension_numbers = #tpu.dot_dimension_numbers<[1], [0], [0], [1], [0, 0, 1, 1], [], []>} : vector<16x768xbf16>, vector<768x128xbf16>, vector<16x128xf32> -> vector<16x128xf32>
    %c0_14 = arith.constant 0 : index
    %c128 = arith.constant 128 : index
    %18 = vector.load %arg7[%c0_14, %c128] : memref<1x384xf32, #tpu.memory_space<vmem>>, vector<1x128xf32>
    %19 = vector.broadcast %18 : vector<1x128xf32> to vector<16x128xf32>
    %20 = arith.addf %17, %19 : vector<16x128xf32>
    %21 = arith.mulf %20, %20 : vector<16x128xf32>
    %cst_15 = arith.constant dense<0.000000e+00> : vector<16xf32>
    %22 = vector.multi_reduction <add>, %21, %cst_15 [1] : vector<16x128xf32> to vector<16xf32>
    %23 = vector.shape_cast %22 : vector<16xf32> to vector<16x1xf32>
    %cst_16 = arith.constant 1.000000e-24 : f32
    %24 = vector.broadcast %cst_16 : f32 to vector<16x1xf32>
    %25 = arith.maximumf %23, %24 : vector<16x1xf32>
    %26 = math.rsqrt %25 : vector<16x1xf32>
    %27 = vector.broadcast %26 : vector<16x1xf32> to vector<16x128xf32>
    %28 = arith.mulf %20, %27 : vector<16x128xf32>
    %c0_17 = arith.constant 0 : index
    %c128_18 = arith.constant 128 : index
    %29 = vector.load %arg8[%c0_17, %c128_18] : memref<16x384xf32, #tpu.memory_space<vmem>>, vector<16x128xf32>
    tpu.vector_store %arg8[%c0_17, %c128_18], %28 {strides = array<i32>} : memref<16x384xf32, #tpu.memory_space<vmem>>, vector<16x128xf32>,
    %c0_19 = arith.constant 0 : index
    %c0_20 = arith.constant 0 : index
    %30 = vector.load %arg3[%c0_19, %c0_20] : memref<16x256xbf16, #tpu.memory_space<vmem>>, vector<16x256xbf16>
    %c0_21 = arith.constant 0 : index
    %c0_22 = arith.constant 0 : index
    %31 = vector.load %arg6[%c0_21, %c0_22] : memref<256x128xbf16, #tpu.memory_space<vmem>>, vector<256x128xbf16>
    %cst_23 = arith.constant dense<0.000000e+00> : vector<16x128xf32>
    %32 = tpu.matmul %30, %31, %cst_23 {dimension_numbers = #tpu.dot_dimension_numbers<[1], [0], [0], [1], [0, 0, 1, 1], [], []>} : vector<16x256xbf16>, vector<256x128xbf16>, vector<16x128xf32> -> vector<16x128xf32>
    %c0_24 = arith.constant 0 : index
    %c256 = arith.constant 256 : index
    %33 = vector.load %arg7[%c0_24, %c256] : memref<1x384xf32, #tpu.memory_space<vmem>>, vector<1x128xf32>
    %34 = vector.broadcast %33 : vector<1x128xf32> to vector<16x128xf32>
    %35 = arith.addf %32, %34 : vector<16x128xf32>
    %36 = arith.mulf %35, %35 : vector<16x128xf32>
    %cst_25 = arith.constant dense<0.000000e+00> : vector<16xf32>
    %37 = vector.multi_reduction <add>, %36, %cst_25 [1] : vector<16x128xf32> to vector<16xf32>
    %38 = vector.shape_cast %37 : vector<16xf32> to vector<16x1xf32>
    %cst_26 = arith.constant 1.000000e-24 : f32
    %39 = vector.broadcast %cst_26 : f32 to vector<16x1xf32>
    %40 = arith.maximumf %38, %39 : vector<16x1xf32>
    %41 = math.rsqrt %40 : vector<16x1xf32>
    %42 = vector.broadcast %41 : vector<16x1xf32> to vector<16x128xf32>
    %43 = arith.mulf %35, %42 : vector<16x128xf32>
    %c0_27 = arith.constant 0 : index
    %c256_28 = arith.constant 256 : index
    %44 = vector.load %arg8[%c0_27, %c256_28] : memref<16x384xf32, #tpu.memory_space<vmem>>, vector<16x128xf32>
    tpu.vector_store %arg8[%c0_27, %c256_28], %43 {strides = array<i32>} : memref<16x384xf32, #tpu.memory_space<vmem>>, vector<16x128xf32>,
    return
  }
  func.func @transform_0(%arg0: i32) -> (i32, i32) {
    %c0_i32 = arith.constant 0 : i32
    %c0_i32_0 = arith.constant 0 : i32
    return %arg0, %c0_i32 : i32, i32
  }
  func.func @transform_1(%arg0: i32) -> (i32, i32) {
    %c0_i32 = arith.constant 0 : i32
    %c0_i32_0 = arith.constant 0 : i32
    return %arg0, %c0_i32 : i32, i32
  }
  func.func @transform_2(%arg0: i32) -> (i32, i32) {
    %c0_i32 = arith.constant 0 : i32
    %c0_i32_0 = arith.constant 0 : i32
    return %arg0, %c0_i32 : i32, i32
  }
  func.func @transform_3(%arg0: i32) -> (i32, i32) {
    %c0_i32 = arith.constant 0 : i32
    %c0_i32_0 = arith.constant 0 : i32
    %c0_i32_1 = arith.constant 0 : i32
    return %c0_i32, %c0_i32_0 : i32, i32
  }
  func.func @transform_4(%arg0: i32) -> (i32, i32) {
    %c0_i32 = arith.constant 0 : i32
    %c0_i32_0 = arith.constant 0 : i32
    %c0_i32_1 = arith.constant 0 : i32
    return %c0_i32, %c0_i32_0 : i32, i32
  }
  func.func @transform_5(%arg0: i32) -> (i32, i32) {
    %c0_i32 = arith.constant 0 : i32
    %c0_i32_0 = arith.constant 0 : i32
    %c0_i32_1 = arith.constant 0 : i32
    return %c0_i32, %c0_i32_0 : i32, i32
  }
  func.func @transform_6(%arg0: i32) -> (i32, i32) {
    %c0_i32 = arith.constant 0 : i32
    %c0_i32_0 = arith.constant 0 : i32
    %c0_i32_1 = arith.constant 0 : i32
    return %c0_i32, %c0_i32_0 : i32, i32
  }
  func.func @transform_7(%arg0: i32) -> (i32, i32) {
    %c0_i32 = arith.constant 0 : i32
    %c0_i32_0 = arith.constant 0 : i32
    return %arg0, %c0_i32 : i32, i32
  }
}

</mosaic_0001>

<llo_original>
// kernel: tpu_custom_call.1
$region0: #{tpu_custom_call.1}
  #allocation0 [shape = 'u32[]', space=smem, size = 0x4, offset = 0x4, fixed_abs, tag = 'smem constant byte address 0x4 - core index']
  #allocation1 [shape = 'u32[144,128]{1,0:T(1,128)}', space=vmem, size = 0x12000, scoped, tag = 'internal scratch']
  %s0 = inlined_call_operand.hbm [shape: bf16[16,768], index: 0, kind: input, shape index: {}]
  %s1 = inlined_call_operand.hbm [shape: bf16[16,768], index: 1, kind: input, shape index: {}]
  %s2 = inlined_call_operand.hbm [shape: bf16[16,256], index: 2, kind: input, shape index: {}]
  %s3 = inlined_call_operand.hbm [shape: bf16[768,128], index: 3, kind: input, shape index: {}]
  %s4 = inlined_call_operand.hbm [shape: bf16[768,128], index: 4, kind: input, shape index: {}]
  %s5 = inlined_call_operand.hbm [shape: bf16[256,128], index: 5, kind: input, shape index: {}]
  %s6 = inlined_call_operand.vmem [shape: f32[1,384], index: 6, kind: input, shape index: {}]
  %s7 = inlined_call_operand.hbm [shape: f32[16,384], index: 7, kind: output, shape index: {}]
  %s8 = sld [smem:[#allocation0]]
  $region62: #{tpu_custom_call.1} parent=0
    _
  %s10 = ssub.s32 1, %s8
  %s11 = scalar_select 0, %s10, %s8
  $region1: #{tpu_custom_call.1} parent=0
    #allocation2 [shape = 'u8[24576]{0}', space=vmem, size = 0x6000, scoped, tag = 'input window, operand 0, single buffered']
    #allocation3 [shape = 's32[1]{0}', space=sflag, size = 0x4, scoped, tag = 'scoped memory for tpu_custom_call.1']
    #allocation4 [shape = 's32[1]{0}', space=sflag, size = 0x4, scoped, tag = 'scoped memory for tpu_custom_call.1']
    #allocation5 [shape = 'u8[24576]{0}', space=vmem, size = 0x6000, scoped, tag = 'input window, operand 1, single buffered']
    #allocation6 [shape = 's32[1]{0}', space=sflag, size = 0x4, scoped, tag = 'scoped memory for tpu_custom_call.1']
    #allocation7 [shape = 'u8[8192]{0}', space=vmem, size = 0x2000, scoped, tag = 'input window, operand 2, single buffered']
    #allocation8 [shape = 'u8[196608]{0}', space=vmem, size = 0x30000, scoped, tag = 'input window, operand 3, single buffered']
    #allocation9 [shape = 's32[1]{0}', space=sflag, size = 0x4, scoped, tag = 'scoped memory for tpu_custom_call.1']
    #allocation10 [shape = 'u8[196608]{0}', space=vmem, size = 0x30000, scoped, tag = 'input window, operand 4, single buffered']
    #allocation11 [shape = 'u8[65536]{0}', space=vmem, size = 0x10000, scoped, tag = 'input window, operand 5, single buffered']
    #allocation12 [shape = 's32[1]{0}', space=sflag, size = 0x4, scoped, tag = 'scoped memory for tpu_custom_call.1']
    #allocation13 [shape = 'u8[24576]{0}', space=vmem, size = 0x6000, scoped, tag = 'output window, operand 0, single buffered']
    %12 = vsyncpa [#allocation3], 0
    %13 = vsyncpa [#allocation6], 0
    %14 = vsyncpa [#allocation9], 0
    %15 = vsyncpa [#allocation12], 0
    %16 = vsyncpa [#allocation4], 0
    // Predicated region
    $region2: #{tpu_custom_call.1} parent=1 // pred_check
      _
    $region3: #{tpu_custom_call.1} parent=1 // pred_check_branch
      %18 = sbr.rel (0) target = $region5
    $region4: #{tpu_custom_call.1} parent=1 // pred_region
      %s20 = ssub.s32 768, 768
      %21 = vsyncadd [#allocation3], %s20
      %s22 = sshll.u32 [#allocation2], 4
      %s23 = int_to_ptr.vmem [resolvable:$true] %s22
      %28 = dma.hbm_to_vmem [thread:$0]  %s0, 768, %s23, [#allocation3], 384, 384, 24
    $region5: #{tpu_custom_call.1} parent=1 // pred_fallthru
      _
    // Predicated region
    $region6: #{tpu_custom_call.1} parent=1 // pred_check
      _
    $region7: #{tpu_custom_call.1} parent=1 // pred_check_branch
      %30 = sbr.rel (0) target = $region9
    $region8: #{tpu_custom_call.1} parent=1 // pred_region
      %s32 = ssub.s32 768, 768
      %33 = vsyncadd [#allocation6], %s32
      %s34 = sshll.u32 [#allocation5], 4
      %s35 = int_to_ptr.vmem [resolvable:$true] %s34
      %40 = dma.hbm_to_vmem [thread:$0]  %s1, 768, %s35, [#allocation6], 384, 384, 24
    $region9: #{tpu_custom_call.1} parent=1 // pred_fallthru
      _
    // Predicated region
    $region10: #{tpu_custom_call.1} parent=1 // pred_check
      _
    $region11: #{tpu_custom_call.1} parent=1 // pred_check_branch
      %42 = sbr.rel (0) target = $region13
    $region12: #{tpu_custom_call.1} parent=1 // pred_region
      %s44 = ssub.s32 256, 256
      %45 = vsyncadd [#allocation6], %s44
      %s46 = sshll.u32 [#allocation7], 4
      %s47 = int_to_ptr.vmem [resolvable:$true] %s46
      %52 = dma.hbm_to_vmem [thread:$0]  %s2, 256, %s47, [#allocation6], 128, 128, 8
    $region13: #{tpu_custom_call.1} parent=1 // pred_fallthru
      _
    // Predicated region
    $region14: #{tpu_custom_call.1} parent=1 // pred_check
      _
    $region15: #{tpu_custom_call.1} parent=1 // pred_check_branch
      %54 = sbr.rel (0) target = $region17
    $region16: #{tpu_custom_call.1} parent=1 // pred_region
      %s56 = ssub.s32 6144, 6144
      %57 = vsyncadd [#allocation9], %s56
      %s58 = sshll.u32 [#allocation8], 4
      %s59 = int_to_ptr.vmem [resolvable:$true] %s58
      %64 = dma.hbm_to_vmem [thread:$0]  %s3, 6144, %s59, [#allocation9], 64, 64, 4
    $region17: #{tpu_custom_call.1} parent=1 // pred_fallthru
      _
    // Predicated region
    $region18: #{tpu_custom_call.1} parent=1 // pred_check
      _
    $region19: #{tpu_custom_call.1} parent=1 // pred_check_branch
      %66 = sbr.rel (0) target = $region21
    $region20: #{tpu_custom_call.1} parent=1 // pred_region
      %s68 = ssub.s32 6144, 6144
      %69 = vsyncadd [#allocation9], %s68
      %s70 = sshll.u32 [#allocation10], 4
      %s71 = int_to_ptr.vmem [resolvable:$true] %s70
      %76 = dma.hbm_to_vmem [thread:$0]  %s4, 6144, %s71, [#allocation9], 64, 64, 4
    $region21: #{tpu_custom_call.1} parent=1 // pred_fallthru
      _
    // Predicated region
    $region22: #{tpu_custom_call.1} parent=1 // pred_check
      _
    $region23: #{tpu_custom_call.1} parent=1 // pred_check_branch
      %78 = sbr.rel (0) target = $region25
    $region24: #{tpu_custom_call.1} parent=1 // pred_region
      %s80 = ssub.s32 2048, 2048
      %81 = vsyncadd [#allocation12], %s80
      %s82 = sshll.u32 [#allocation11], 4
      %s83 = int_to_ptr.vmem [resolvable:$true] %s82
      %88 = dma.hbm_to_vmem [thread:$0]  %s5, 2048, %s83, [#allocation12], 64, 64, 4
    $region25: #{tpu_custom_call.1} parent=1 // pred_fallthru
      _
    // Predicated region
    $region26: #{tpu_custom_call.1} parent=1 // pred_check
      _
    $region27: #{tpu_custom_call.1} parent=1 // pred_check_branch
      %90 = sbr.rel (0) target = $region29
    $region28: #{tpu_custom_call.1} parent=1 // pred_region
      _
    $region29: #{tpu_custom_call.1} parent=1 // pred_fallthru
      _
    // Predicated region
    $region30: #{tpu_custom_call.1} parent=1 // pred_check
      _
    $region31: #{tpu_custom_call.1} parent=1 // pred_check_branch
      %92 = sbr.rel (0) target = $region33
    $region32: #{tpu_custom_call.1} parent=1 // pred_region
      %93 = dma.done [#allocation3], 768
    $region33: #{tpu_custom_call.1} parent=1 // pred_fallthru
      _
    // Predicated region
    $region34: #{tpu_custom_call.1} parent=1 // pred_check
      _
    $region35: #{tpu_custom_call.1} parent=1 // pred_check_branch
      %95 = sbr.rel (0) target = $region37
    $region36: #{tpu_custom_call.1} parent=1 // pred_region
      %96 = dma.done [#allocation6], 768
    $region37: #{tpu_custom_call.1} parent=1 // pred_fallthru
      _
    // Predicated region
    $region38: #{tpu_custom_call.1} parent=1 // pred_check
      _
    $region39: #{tpu_custom_call.1} parent=1 // pred_check_branch
      %98 = sbr.rel (0) target = $region41
    $region40: #{tpu_custom_call.1} parent=1 // pred_region
      %99 = dma.done [#allocation6], 256
    $region41: #{tpu_custom_call.1} parent=1 // pred_fallthru
      _
    // Predicated region
    $region42: #{tpu_custom_call.1} parent=1 // pred_check
      _
    $region43: #{tpu_custom_call.1} parent=1 // pred_check_branch
      %101 = sbr.rel (0) target = $region45
    $region44: #{tpu_custom_call.1} parent=1 // pred_region
      %102 = dma.done [#allocation9], 6144
    $region45: #{tpu_custom_call.1} parent=1 // pred_fallthru
      _
    // Predicated region
    $region46: #{tpu_custom_call.1} parent=1 // pred_check
      _
    $region47: #{tpu_custom_call.1} parent=1 // pred_check_branch
      %104 = sbr.rel (0) target = $region49
    $region48: #{tpu_custom_call.1} parent=1 // pred_region
      %105 = dma.done [#allocation9], 6144
    $region49: #{tpu_custom_call.1} parent=1 // pred_fallthru
      _
    // Predicated region
    $region50: #{tpu_custom_call.1} parent=1 // pred_check
      _
    $region51: #{tpu_custom_call.1} parent=1 // pred_check_branch
      %107 = sbr.rel (0) target = $region53
    $region52: #{tpu_custom_call.1} parent=1 // pred_region
      %108 = dma.done [#allocation12], 2048
    $region53: #{tpu_custom_call.1} parent=1 // pred_fallthru
      _
    %v110 = vld [vmem:[#allocation2] sm:$0xff]
    %v111 = vld [vmem:[#allocation2 + $0x8] sm:$0xff]
    %v112 = vld [vmem:[#allocation2 + $0x10] sm:$0xff]
    %v113 = vld [vmem:[#allocation2 + $0x18] sm:$0xff]
    %v114 = vld [vmem:[#allocation2 + $0x20] sm:$0xff]
    %v115 = vld [vmem:[#allocation2 + $0x28] sm:$0xff]
    %v116 = vld [vmem:[#allocation8] sm:$0xf]
    %v117 = vld [vmem:[#allocation8 + $0x4] sm:$0xf]
    %v118 = vld [vmem:[#allocation8 + $0x8] sm:$0xf]
    %v119 = vld [vmem:[#allocation8 + $0xc] sm:$0xf]
    %v120 = vld [vmem:[#allocation8 + $0x10] sm:$0xf]
    %v121 = vld [vmem:[#allocation8 + $0x14] sm:$0xf]
    %v122 = vld [vmem:[#allocation8 + $0x18] sm:$0xf]
    %v123 = vld [vmem:[#allocation8 + $0x1c] sm:$0xf]
    %v124 = vld [vmem:[#allocation8 + $0x20] sm:$0xf]
    %v125 = vld [vmem:[#allocation8 + $0x24] sm:$0xf]
    %v126 = vld [vmem:[#allocation8 + $0x28] sm:$0xf]
    %v127 = vld [vmem:[#allocation8 + $0x2c] sm:$0xf]
    %v128 = vld [vmem:[#allocation8 + $0x30] sm:$0xf]
    %v129 = vld [vmem:[#allocation8 + $0x34] sm:$0xf]
    %v130 = vld [vmem:[#allocation8 + $0x38] sm:$0xf]
    %v131 = vld [vmem:[#allocation8 + $0x3c] sm:$0xf]
    %v132 = vld [vmem:[#allocation8 + $0x40] sm:$0xf]
    %v133 = vld [vmem:[#allocation8 + $0x44] sm:$0xf]
    %v134 = vld [vmem:[#allocation8 + $0x48] sm:$0xf]
    %v135 = vld [vmem:[#allocation8 + $0x4c] sm:$0xf]
    %v136 = vld [vmem:[#allocation8 + $0x50] sm:$0xf]
    %v137 = vld [vmem:[#allocation8 + $0x54] sm:$0xf]
    %v138 = vld [vmem:[#allocation8 + $0x58] sm:$0xf]
    %v139 = vld [vmem:[#allocation8 + $0x5c] sm:$0xf]
    %v140 = vld [vmem:[#allocation8 + $0x60] sm:$0xf]
    %v141 = vld [vmem:[#allocation8 + $0x64] sm:$0xf]
    %v142 = vld [vmem:[#allocation8 + $0x68] sm:$0xf]
    %v143 = vld [vmem:[#allocation8 + $0x6c] sm:$0xf]
    %v144 = vld [vmem:[#allocation8 + $0x70] sm:$0xf]
    %v145 = vld [vmem:[#allocation8 + $0x74] sm:$0xf]
    %v146 = vld [vmem:[#allocation8 + $0x78] sm:$0xf]
    %v147 = vld [vmem:[#allocation8 + $0x7c] sm:$0xf]
    %v148 = vld [vmem:[#allocation8 + $0x80] sm:$0xf]
    %v149 = vld [vmem:[#allocation8 + $0x84] sm:$0xf]
    %v150 = vld [vmem:[#allocation8 + $0x88] sm:$0xf]
    %v151 = vld [vmem:[#allocation8 + $0x8c] sm:$0xf]
    %v152 = vld [vmem:[#allocation8 + $0x90] sm:$0xf]
    %v153 = vld [vmem:[#allocation8 + $0x94] sm:$0xf]
    %v154 = vld [vmem:[#allocation8 + $0x98] sm:$0xf]
    %v155 = vld [vmem:[#allocation8 + $0x9c] sm:$0xf]
    %v156 = vld [vmem:[#allocation8 + $0xa0] sm:$0xf]
    %v157 = vld [vmem:[#allocation8 + $0xa4] sm:$0xf]
    %v158 = vld [vmem:[#allocation8 + $0xa8] sm:$0xf]
    %v159 = vld [vmem:[#allocation8 + $0xac] sm:$0xf]
    %v160 = vld [vmem:[#allocation8 + $0xb0] sm:$0xf]
    %v161 = vld [vmem:[#allocation8 + $0xb4] sm:$0xf]
    %v162 = vld [vmem:[#allocation8 + $0xb8] sm:$0xf]
    %v163 = vld [vmem:[#allocation8 + $0xbc] sm:$0xf]
    %v164 = vld [vmem:[#allocation8 + $0xc0] sm:$0xf]
    %v165 = vld [vmem:[#allocation8 + $0xc4] sm:$0xf]
    %v166 = vld [vmem:[#allocation8 + $0xc8] sm:$0xf]
    %v167 = vld [vmem:[#allocation8 + $0xcc] sm:$0xf]
    %v168 = vld [vmem:[#allocation8 + $0xd0] sm:$0xf]
    %v169 = vld [vmem:[#allocation8 + $0xd4] sm:$0xf]
    %v170 = vld [vmem:[#allocation8 + $0xd8] sm:$0xf]
    %v171 = vld [vmem:[#allocation8 + $0xdc] sm:$0xf]
    %v172 = vld [vmem:[#allocation8 + $0xe0] sm:$0xf]
    %v173 = vld [vmem:[#allocation8 + $0xe4] sm:$0xf]
    %v174 = vld [vmem:[#allocation8 + $0xe8] sm:$0xf]
    %v175 = vld [vmem:[#allocation8 + $0xec] sm:$0xf]
    %v176 = vld [vmem:[#allocation8 + $0xf0] sm:$0xf]
    %v177 = vld [vmem:[#allocation8 + $0xf4] sm:$0xf]
    %v178 = vld [vmem:[#allocation8 + $0xf8] sm:$0xf]
    %v179 = vld [vmem:[#allocation8 + $0xfc] sm:$0xf]
    %v180 = vld [vmem:[#allocation8 + $0x100] sm:$0xf]
    %v181 = vld [vmem:[#allocation8 + $0x104] sm:$0xf]
    %v182 = vld [vmem:[#allocation8 + $0x108] sm:$0xf]
    %v183 = vld [vmem:[#allocation8 + $0x10c] sm:$0xf]
    %v184 = vld [vmem:[#allocation8 + $0x110] sm:$0xf]
    %v185 = vld [vmem:[#allocation8 + $0x114] sm:$0xf]
    %v186 = vld [vmem:[#allocation8 + $0x118] sm:$0xf]
    %v187 = vld [vmem:[#allocation8 + $0x11c] sm:$0xf]
    %v188 = vld [vmem:[#allocation8 + $0x120] sm:$0xf]
    %v189 = vld [vmem:[#allocation8 + $0x124] sm:$0xf]
    %v190 = vld [vmem:[#allocation8 + $0x128] sm:$0xf]
    %v191 = vld [vmem:[#allocation8 + $0x12c] sm:$0xf]
    %v192 = vld [vmem:[#allocation8 + $0x130] sm:$0xf]
    %v193 = vld [vmem:[#allocation8 + $0x134] sm:$0xf]
    %v194 = vld [vmem:[#allocation8 + $0x138] sm:$0xf]
    %v195 = vld [vmem:[#allocation8 + $0x13c] sm:$0xf]
    %v196 = vld [vmem:[#allocation8 + $0x140] sm:$0xf]
    %v197 = vld [vmem:[#allocation8 + $0x144] sm:$0xf]
    %v198 = vld [vmem:[#allocation8 + $0x148] sm:$0xf]
    %v199 = vld [vmem:[#allocation8 + $0x14c] sm:$0xf]
    %v200 = vld [vmem:[#allocation8 + $0x150] sm:$0xf]
    %v201 = vld [vmem:[#allocation8 + $0x154] sm:$0xf]
    %v202 = vld [vmem:[#allocation8 + $0x158] sm:$0xf]
    %v203 = vld [vmem:[#allocation8 + $0x15c] sm:$0xf]
    %v204 = vld [vmem:[#allocation8 + $0x160] sm:$0xf]
    %v205 = vld [vmem:[#allocation8 + $0x164] sm:$0xf]
    %v206 = vld [vmem:[#allocation8 + $0x168] sm:$0xf]
    %v207 = vld [vmem:[#allocation8 + $0x16c] sm:$0xf]
    %v208 = vld [vmem:[#allocation8 + $0x170] sm:$0xf]
    %v209 = vld [vmem:[#allocation8 + $0x174] sm:$0xf]
    %v210 = vld [vmem:[#allocation8 + $0x178] sm:$0xf]
    %v211 = vld [vmem:[#allocation8 + $0x17c] sm:$0xf]
    %v212 = vld [vmem:[%s6] sm:$0x1]
    %v214 = vlaneseq
    %v215 = vshrl.u32 %v214, 7
    %v216 = vsub.s32 0, %v215
    %v217 = vrot.slane %v212, %v216
    %v225 = vunpack.c.l.b16 %v110
    %v226 = vunpack.c.h.b16 %v110
    %v227 = vunpack.c.l.b16 %v111
    %v228 = vunpack.c.h.b16 %v111
    %v229 = vunpack.c.l.b16 %v112
    %v230 = vunpack.c.h.b16 %v112
    %v231 = vunpack.c.l.b16 %v113
    %v232 = vunpack.c.h.b16 %v113
    %v233 = vunpack.c.l.b16 %v114
    %v234 = vunpack.c.h.b16 %v114
    %v235 = vunpack.c.l.b16 %v115
    %v236 = vunpack.c.h.b16 %v115
    %v237 = vpack.c.b16 %v231, %v225
    %v238 = vpack.c.b16 %v232, %v226
    %v239 = vpack.c.b16 %v233, %v227
    %v240 = vpack.c.b16 %v234, %v228
    %v241 = vpack.c.b16 %v235, %v229
    %v242 = vpack.c.b16 %v236, %v230
    %v345 = vunpack.c.l.b16 %v116
    %v346 = vunpack.c.l.b16 %v117
    %v347 = vunpack.c.l.b16 %v118
    %v348 = vunpack.c.l.b16 %v119
    %v349 = vunpack.c.l.b16 %v120
    %v350 = vunpack.c.l.b16 %v121
    %v351 = vunpack.c.l.b16 %v122
    %v352 = vunpack.c.l.b16 %v123
    %v353 = vunpack.c.l.b16 %v124
    %v354 = vunpack.c.l.b16 %v125
    %v355 = vunpack.c.l.b16 %v126
    %v356 = vunpack.c.l.b16 %v127
    %v357 = vunpack.c.l.b16 %v128
    %v358 = vunpack.c.l.b16 %v129
    %v359 = vunpack.c.l.b16 %v130
    %v360 = vunpack.c.l.b16 %v131
    %v361 = vunpack.c.l.b16 %v132
    %v362 = vunpack.c.l.b16 %v133
    %v363 = vunpack.c.l.b16 %v134
    %v364 = vunpack.c.l.b16 %v135
    %v365 = vunpack.c.l.b16 %v136
    %v366 = vunpack.c.l.b16 %v137
    %v367 = vunpack.c.l.b16 %v138
    %v368 = vunpack.c.l.b16 %v139
    %v369 = vunpack.c.l.b16 %v140
    %v370 = vunpack.c.l.b16 %v141
    %v371 = vunpack.c.l.b16 %v142
    %v372 = vunpack.c.l.b16 %v143
    %v373 = vunpack.c.l.b16 %v144
    %v374 = vunpack.c.l.b16 %v145
    %v375 = vunpack.c.l.b16 %v146
    %v376 = vunpack.c.l.b16 %v147
    %v377 = vunpack.c.l.b16 %v148
    %v378 = vunpack.c.l.b16 %v149
    %v379 = vunpack.c.l.b16 %v150
    %v380 = vunpack.c.l.b16 %v151
    %v381 = vunpack.c.l.b16 %v152
    %v382 = vunpack.c.l.b16 %v153
    %v383 = vunpack.c.l.b16 %v154
    %v384 = vunpack.c.l.b16 %v155
    %v385 = vunpack.c.l.b16 %v156
    %v386 = vunpack.c.l.b16 %v157
    %v387 = vunpack.c.l.b16 %v158
    %v388 = vunpack.c.l.b16 %v159
    %v389 = vunpack.c.l.b16 %v160
    %v390 = vunpack.c.l.b16 %v161
    %v391 = vunpack.c.l.b16 %v162
    %v392 = vunpack.c.l.b16 %v163
    %v393 = vunpack.c.l.b16 %v164
    %v394 = vunpack.c.l.b16 %v165
    %v395 = vunpack.c.l.b16 %v166
    %v396 = vunpack.c.l.b16 %v167
    %v397 = vunpack.c.l.b16 %v168
    %v398 = vunpack.c.l.b16 %v169
    %v399 = vunpack.c.l.b16 %v170
    %v400 = vunpack.c.l.b16 %v171
    %v401 = vunpack.c.l.b16 %v172
    %v402 = vunpack.c.l.b16 %v173
    %v403 = vunpack.c.l.b16 %v174
    %v404 = vunpack.c.l.b16 %v175
    %v405 = vunpack.c.l.b16 %v176
    %v406 = vunpack.c.l.b16 %v177
    %v407 = vunpack.c.l.b16 %v178
    %v408 = vunpack.c.l.b16 %v179
    %v409 = vunpack.c.l.b16 %v180
    %v410 = vunpack.c.l.b16 %v181
    %v411 = vunpack.c.l.b16 %v182
    %v412 = vunpack.c.l.b16 %v183
    %v413 = vunpack.c.l.b16 %v184
    %v414 = vunpack.c.l.b16 %v185
    %v415 = vunpack.c.l.b16 %v186
    %v416 = vunpack.c.l.b16 %v187
    %v417 = vunpack.c.l.b16 %v188
    %v418 = vunpack.c.l.b16 %v189
    %v419 = vunpack.c.l.b16 %v190
    %v420 = vunpack.c.l.b16 %v191
    %v421 = vunpack.c.l.b16 %v192
    %v422 = vunpack.c.l.b16 %v193
    %v423 = vunpack.c.l.b16 %v194
    %v424 = vunpack.c.l.b16 %v195
    %v425 = vunpack.c.l.b16 %v196
    %v426 = vunpack.c.l.b16 %v197
    %v427 = vunpack.c.l.b16 %v198
    %v428 = vunpack.c.l.b16 %v199
    %v429 = vunpack.c.l.b16 %v200
    %v430 = vunpack.c.l.b16 %v201
    %v431 = vunpack.c.l.b16 %v202
    %v432 = vunpack.c.l.b16 %v203
    %v433 = vunpack.c.l.b16 %v204
    %v434 = vunpack.c.l.b16 %v205
    %v435 = vunpack.c.l.b16 %v206
    %v436 = vunpack.c.l.b16 %v207
    %v437 = vunpack.c.l.b16 %v208
    %v438 = vunpack.c.l.b16 %v209
    %v439 = vunpack.c.l.b16 %v210
    %v440 = vunpack.c.l.b16 %v211
    %v441 = vpack.c.b16 %v346, %v345
    %v442 = vpack.c.b16 %v348, %v347
    %v443 = vpack.c.b16 %v350, %v349
    %v444 = vpack.c.b16 %v352, %v351
    %v445 = vpack.c.b16 %v354, %v353
    %v446 = vpack.c.b16 %v356, %v355
    %v447 = vpack.c.b16 %v358, %v357
    %v448 = vpack.c.b16 %v360, %v359
    %v449 = vpack.c.b16 %v362, %v361
    %v450 = vpack.c.b16 %v364, %v363
    %v451 = vpack.c.b16 %v366, %v365
    %v452 = vpack.c.b16 %v368, %v367
    %v453 = vpack.c.b16 %v370, %v369
    %v454 = vpack.c.b16 %v372, %v371
    %v455 = vpack.c.b16 %v374, %v373
    %v456 = vpack.c.b16 %v376, %v375
    %v457 = vpack.c.b16 %v378, %v377
    %v458 = vpack.c.b16 %v380, %v379
    %v459 = vpack.c.b16 %v382, %v381
    %v460 = vpack.c.b16 %v384, %v383
    %v461 = vpack.c.b16 %v386, %v385
    %v462 = vpack.c.b16 %v388, %v387
    %v463 = vpack.c.b16 %v390, %v389
    %v464 = vpack.c.b16 %v392, %v391
    %v465 = vpack.c.b16 %v394, %v393
    %v466 = vpack.c.b16 %v396, %v395
    %v467 = vpack.c.b16 %v398, %v397
    %v468 = vpack.c.b16 %v400, %v399
    %v469 = vpack.c.b16 %v402, %v401
    %v470 = vpack.c.b16 %v404, %v403
    %v471 = vpack.c.b16 %v406, %v405
    %v472 = vpack.c.b16 %v408, %v407
    %v473 = vpack.c.b16 %v410, %v409
    %v474 = vpack.c.b16 %v412, %v411
    %v475 = vpack.c.b16 %v414, %v413
    %v476 = vpack.c.b16 %v416, %v415
    %v477 = vpack.c.b16 %v418, %v417
    %v478 = vpack.c.b16 %v420, %v419
    %v479 = vpack.c.b16 %v422, %v421
    %v480 = vpack.c.b16 %v424, %v423
    %v481 = vpack.c.b16 %v426, %v425
    %v482 = vpack.c.b16 %v428, %v427
    %v483 = vpack.c.b16 %v430, %v429
    %v484 = vpack.c.b16 %v432, %v431
    %v485 = vpack.c.b16 %v434, %v433
    %v486 = vpack.c.b16 %v436, %v435
    %v487 = vpack.c.b16 %v438, %v437
    %v488 = vpack.c.b16 %v440, %v439
    %537 = vmatprep.subr.bf16.mxu0 0
    %538 = vmatpush1.bf16.msra.mxu0 %v441
    %539 = vmatprep.subr.bf16.mxu0 0
    %540 = vmatpush1.bf16.msra.mxu0 %v442
    %541 = vmatprep.subr.bf16.mxu0 0
    %542 = vmatpush1.bf16.msra.mxu0 %v443
    %543 = vmatprep.subr.bf16.mxu0 0
    %544 = vmatpush1.bf16.msra.mxu0 %v444
    %545 = vmatprep.subr.bf16.mxu0 0
    %546 = vmatpush1.bf16.msra.mxu0 %v445
    %547 = vmatprep.subr.bf16.mxu0 0
    %548 = vmatpush1.bf16.msra.mxu0 %v446
    %549 = vmatprep.subr.bf16.mxu0 0
    %550 = vmatpush1.bf16.msra.mxu0 %v447
    %551 = vmatprep.subr.bf16.mxu0 0
    %552 = vmatpush1.bf16.msra.mxu0 %v448
    %553 = vmatprep.subr.bf16.mxu0 0
    %554 = vmatpush1.bf16.msra.mxu0 %v449
    %555 = vmatprep.subr.bf16.mxu0 0
    %556 = vmatpush1.bf16.msra.mxu0 %v450
    %557 = vmatprep.subr.bf16.mxu0 0
    %558 = vmatpush1.bf16.msra.mxu0 %v451
    %559 = vmatprep.subr.bf16.mxu0 0
    %560 = vmatpush1.bf16.msra.mxu0 %v452
    %561 = vmatprep.subr.bf16.mxu0 0
    %562 = vmatpush1.bf16.msra.mxu0 %v453
    %563 = vmatprep.subr.bf16.mxu0 0
    %564 = vmatpush1.bf16.msra.mxu0 %v454
    %565 = vmatprep.subr.bf16.mxu0 0
    %566 = vmatpush1.bf16.msra.mxu0 %v455
    %567 = vmatprep.subr.bf16.mxu0 0
    %568 = vmatpush1.bf16.msra.mxu0 %v456
    %569 = vmatprep.mubr.bf16.mxu0 %v238
    %570 = vmatmul.mubr.bf16.gmra.mrb[0].mxu0 %v237
    %v571 = vpop.f32.mrb[0].mxu0
    %v572 = vadd.f32 %v217, %v571
    %v573 = vpop.f32.mrb[0].mxu0
    %v574 = vpop.f32.mrb[0].mxu0
    %v575 = vadd.f32 %v217, %v574
    %v576 = vpop.f32.mrb[0].mxu0
    %577 = vdwg.mxu0
    %578 = vmatprep.subr.bf16.mxu0 0
    %579 = vmatpush1.bf16.msra.mxu0 %v457
    %580 = vmatprep.subr.bf16.mxu0 0
    %581 = vmatpush1.bf16.msra.mxu0 %v458
    %582 = vmatprep.subr.bf16.mxu0 0
    %583 = vmatpush1.bf16.msra.mxu0 %v459
    %584 = vmatprep.subr.bf16.mxu0 0
    %585 = vmatpush1.bf16.msra.mxu0 %v460
    %586 = vmatprep.subr.bf16.mxu0 0
    %587 = vmatpush1.bf16.msra.mxu0 %v461
    %588 = vmatprep.subr.bf16.mxu0 0
    %589 = vmatpush1.bf16.msra.mxu0 %v462
    %590 = vmatprep.subr.bf16.mxu0 0
    %591 = vmatpush1.bf16.msra.mxu0 %v463
    %592 = vmatprep.subr.bf16.mxu0 0
    %593 = vmatpush1.bf16.msra.mxu0 %v464
    %594 = vmatprep.subr.bf16.mxu0 0
    %595 = vmatpush1.bf16.msra.mxu0 %v465
    %596 = vmatprep.subr.bf16.mxu0 0
    %597 = vmatpush1.bf16.msra.mxu0 %v466
    %598 = vmatprep.subr.bf16.mxu0 0
    %599 = vmatpush1.bf16.msra.mxu0 %v467
    %600 = vmatprep.subr.bf16.mxu0 0
    %601 = vmatpush1.bf16.msra.mxu0 %v468
    %602 = vmatprep.subr.bf16.mxu0 0
    %603 = vmatpush1.bf16.msra.mxu0 %v469
    %604 = vmatprep.subr.bf16.mxu0 0
    %605 = vmatpush1.bf16.msra.mxu0 %v470
    %606 = vmatprep.subr.bf16.mxu0 0
    %607 = vmatpush1.bf16.msra.mxu0 %v471
    %608 = vmatprep.subr.bf16.mxu0 0
    %609 = vmatpush1.bf16.msra.mxu0 %v472
    %610 = vmatprep.mubr.bf16.mxu0 %v240
    %611 = vmatmul.mubr.bf16.gmra.mrb[0].mxu0 %v239
    %v612 = vpop.f32.mrb[0].mxu0
    %v613 = vadd.f32 %v572, %v612
    %v614 = vpop.f32.mrb[0].mxu0
    %v615 = vpop.f32.mrb[0].mxu0
    %v616 = vadd.f32 %v575, %v615
    %v617 = vpop.f32.mrb[0].mxu0
    %618 = vdwg.mxu0
    %619 = vmatprep.subr.bf16.mxu0 0
    %620 = vmatpush1.bf16.msra.mxu0 %v473
    %621 = vmatprep.subr.bf16.mxu0 0
    %622 = vmatpush1.bf16.msra.mxu0 %v474
    %623 = vmatprep.subr.bf16.mxu0 0
    %624 = vmatpush1.bf16.msra.mxu0 %v475
    %625 = vmatprep.subr.bf16.mxu0 0
    %626 = vmatpush1.bf16.msra.mxu0 %v476
    %627 = vmatprep.subr.bf16.mxu0 0
    %628 = vmatpush1.bf16.msra.mxu0 %v477
    %629 = vmatprep.subr.bf16.mxu0 0
    %630 = vmatpush1.bf16.msra.mxu0 %v478
    %631 = vmatprep.subr.bf16.mxu0 0
    %632 = vmatpush1.bf16.msra.mxu0 %v479
    %633 = vmatprep.subr.bf16.mxu0 0
    %634 = vmatpush1.bf16.msra.mxu0 %v480
    %635 = vmatprep.subr.bf16.mxu0 0
    %636 = vmatpush1.bf16.msra.mxu0 %v481
    %637 = vmatprep.subr.bf16.mxu0 0
    %638 = vmatpush1.bf16.msra.mxu0 %v482
    %639 = vmatprep.subr.bf16.mxu0 0
    %640 = vmatpush1.bf16.msra.mxu0 %v483
    %641 = vmatprep.subr.bf16.mxu0 0
    %642 = vmatpush1.bf16.msra.mxu0 %v484
    %643 = vmatprep.subr.bf16.mxu0 0
    %644 = vmatpush1.bf16.msra.mxu0 %v485
    %645 = vmatprep.subr.bf16.mxu0 0
    %646 = vmatpush1.bf16.msra.mxu0 %v486
    %647 = vmatprep.subr.bf16.mxu0 0
    %648 = vmatpush1.bf16.msra.mxu0 %v487
    %649 = vmatprep.subr.bf16.mxu0 0
    %650 = vmatpush1.bf16.msra.mxu0 %v488
    %651 = vmatprep.mubr.bf16.mxu0 %v242
    %652 = vmatmul.mubr.bf16.gmra.mrb[0].mxu0 %v241
    %v653 = vpop.f32.mrb[0].mxu0
    %v654 = vadd.f32 %v613, %v653
    %v655 = vpop.f32.mrb[0].mxu0
    %v656 = vpop.f32.mrb[0].mxu0
    %v657 = vadd.f32 %v616, %v656
    %v658 = vpop.f32.mrb[0].mxu0
    %659 = vdwg.mxu0
    %v660 = vmul.f32 %v654, %v654
    %v661 = vmul.f32 %v657, %v657
    %662 = vadd.xlane.f32.xlu0 %v660
    %v663 = vpop.xlane.xlu0 %662
    %664 = vadd.xlane.f32.xlu0 %v661
    %v665 = vpop.xlane.xlu0 %664
    %v666 = vmax.f32 %v663, 1e-24
    %v667 = vmax.f32 %v665, 1e-24
    %v668 = vrsqrt.pop %v666
    %v669 = vrsqrt.pop %v667
    %v670 = vmul.f32 %v654, %v668
    %v671 = vmul.f32 %v657, %v669
    %672 = vst [vmem:[#allocation13] sm:$0xff] %v670
    %673 = vst [vmem:[#allocation13 + $0x18] sm:$0xff] %v671
    %v674 = vld [vmem:[#allocation5] sm:$0xff]
    %v675 = vld [vmem:[#allocation5 + $0x8] sm:$0xff]
    %v676 = vld [vmem:[#allocation5 + $0x10] sm:$0xff]
    %v677 = vld [vmem:[#allocation5 + $0x18] sm:$0xff]
    %v678 = vld [vmem:[#allocation5 + $0x20] sm:$0xff]
    %v679 = vld [vmem:[#allocation5 + $0x28] sm:$0xff]
    %v680 = vld [vmem:[#allocation10] sm:$0xf]
    %v681 = vld [vmem:[#allocation10 + $0x4] sm:$0xf]
    %v682 = vld [vmem:[#allocation10 + $0x8] sm:$0xf]
    %v683 = vld [vmem:[#allocation10 + $0xc] sm:$0xf]
    %v684 = vld [vmem:[#allocation10 + $0x10] sm:$0xf]
    %v685 = vld [vmem:[#allocation10 + $0x14] sm:$0xf]
    %v686 = vld [vmem:[#allocation10 + $0x18] sm:$0xf]
    %v687 = vld [vmem:[#allocation10 + $0x1c] sm:$0xf]
    %v688 = vld [vmem:[#allocation10 + $0x20] sm:$0xf]
    %v689 = vld [vmem:[#allocation10 + $0x24] sm:$0xf]
    %v690 = vld [vmem:[#allocation10 + $0x28] sm:$0xf]
    %v691 = vld [vmem:[#allocation10 + $0x2c] sm:$0xf]
    %v692 = vld [vmem:[#allocation10 + $0x30] sm:$0xf]
    %v693 = vld [vmem:[#allocation10 + $0x34] sm:$0xf]
    %v694 = vld [vmem:[#allocation10 + $0x38] sm:$0xf]
    %v695 = vld [vmem:[#allocation10 + $0x3c] sm:$0xf]
    %v696 = vld [vmem:[#allocation10 + $0x40] sm:$0xf]
    %v697 = vld [vmem:[#allocation10 + $0x44] sm:$0xf]
    %v698 = vld [vmem:[#allocation10 + $0x48] sm:$0xf]
    %v699 = vld [vmem:[#allocation10 + $0x4c] sm:$0xf]
    %v700 = vld [vmem:[#allocation10 + $0x50] sm:$0xf]
    %v701 = vld [vmem:[#allocation10 + $0x54] sm:$0xf]
    %v702 = vld [vmem:[#allocation10 + $0x58] sm:$0xf]
    %v703 = vld [vmem:[#allocation10 + $0x5c] sm:$0xf]
    %v704 = vld [vmem:[#allocation10 + $0x60] sm:$0xf]
    %v705 = vld [vmem:[#allocation10 + $0x64] sm:$0xf]
    %v706 = vld [vmem:[#allocation10 + $0x68] sm:$0xf]
    %v707 = vld [vmem:[#allocation10 + $0x6c] sm:$0xf]
    %v708 = vld [vmem:[#allocation10 + $0x70] sm:$0xf]
    %v709 = vld [vmem:[#allocation10 + $0x74] sm:$0xf]
    %v710 = vld [vmem:[#allocation10 + $0x78] sm:$0xf]
    %v711 = vld [vmem:[#allocation10 + $0x7c] sm:$0xf]
    %v712 = vld [vmem:[#allocation10 + $0x80] sm:$0xf]
    %v713 = vld [vmem:[#allocation10 + $0x84] sm:$0xf]
    %v714 = vld [vmem:[#allocation10 + $0x88] sm:$0xf]
    %v715 = vld [vmem:[#allocation10 + $0x8c] sm:$0xf]
    %v716 = vld [vmem:[#allocation10 + $0x90] sm:$0xf]
    %v717 = vld [vmem:[#allocation10 + $0x94] sm:$0xf]
    %v718 = vld [vmem:[#allocation10 + $0x98] sm:$0xf]
    %v719 = vld [vmem:[#allocation10 + $0x9c] sm:$0xf]
    %v720 = vld [vmem:[#allocation10 + $0xa0] sm:$0xf]
    %v721 = vld [vmem:[#allocation10 + $0xa4] sm:$0xf]
    %v722 = vld [vmem:[#allocation10 + $0xa8] sm:$0xf]
    %v723 = vld [vmem:[#allocation10 + $0xac] sm:$0xf]
    %v724 = vld [vmem:[#allocation10 + $0xb0] sm:$0xf]
    %v725 = vld [vmem:[#allocation10 + $0xb4] sm:$0xf]
    %v726 = vld [vmem:[#allocation10 + $0xb8] sm:$0xf]
    %v727 = vld [vmem:[#allocation10 + $0xbc] sm:$0xf]
    %v728 = vld [vmem:[#allocation10 + $0xc0] sm:$0xf]
    %v729 = vld [vmem:[#allocation10 + $0xc4] sm:$0xf]
    %v730 = vld [vmem:[#allocation10 + $0xc8] sm:$0xf]
    %v731 = vld [vmem:[#allocation10 + $0xcc] sm:$0xf]
    %v732 = vld [vmem:[#allocation10 + $0xd0] sm:$0xf]
    %v733 = vld [vmem:[#allocation10 + $0xd4] sm:$0xf]
    %v734 = vld [vmem:[#allocation10 + $0xd8] sm:$0xf]
    %v735 = vld [vmem:[#allocation10 + $0xdc] sm:$0xf]
    %v736 = vld [vmem:[#allocation10 + $0xe0] sm:$0xf]
    %v737 = vld [vmem:[#allocation10 + $0xe4] sm:$0xf]
    %v738 = vld [vmem:[#allocation10 + $0xe8] sm:$0xf]
    %v739 = vld [vmem:[#allocation10 + $0xec] sm:$0xf]
    %v740 = vld [vmem:[#allocation10 + $0xf0] sm:$0xf]
    %v741 = vld [vmem:[#allocation10 + $0xf4] sm:$0xf]
    %v742 = vld [vmem:[#allocation10 + $0xf8] sm:$0xf]
    %v743 = vld [vmem:[#allocation10 + $0xfc] sm:$0xf]
    %v744 = vld [vmem:[#allocation10 + $0x100] sm:$0xf]
    %v745 = vld [vmem:[#allocation10 + $0x104] sm:$0xf]
    %v746 = vld [vmem:[#allocation10 + $0x108] sm:$0xf]
    %v747 = vld [vmem:[#allocation10 + $0x10c] sm:$0xf]
    %v748 = vld [vmem:[#allocation10 + $0x110] sm:$0xf]
    %v749 = vld [vmem:[#allocation10 + $0x114] sm:$0xf]
    %v750 = vld [vmem:[#allocation10 + $0x118] sm:$0xf]
    %v751 = vld [vmem:[#allocation10 + $0x11c] sm:$0xf]
    %v752 = vld [vmem:[#allocation10 + $0x120] sm:$0xf]
    %v753 = vld [vmem:[#allocation10 + $0x124] sm:$0xf]
    %v754 = vld [vmem:[#allocation10 + $0x128] sm:$0xf]
    %v755 = vld [vmem:[#allocation10 + $0x12c] sm:$0xf]
    %v756 = vld [vmem:[#allocation10 + $0x130] sm:$0xf]
    %v757 = vld [vmem:[#allocation10 + $0x134] sm:$0xf]
    %v758 = vld [vmem:[#allocation10 + $0x138] sm:$0xf]
    %v759 = vld [vmem:[#allocation10 + $0x13c] sm:$0xf]
    %v760 = vld [vmem:[#allocation10 + $0x140] sm:$0xf]
    %v761 = vld [vmem:[#allocation10 + $0x144] sm:$0xf]
    %v762 = vld [vmem:[#allocation10 + $0x148] sm:$0xf]
    %v763 = vld [vmem:[#allocation10 + $0x14c] sm:$0xf]
    %v764 = vld [vmem:[#allocation10 + $0x150] sm:$0xf]
    %v765 = vld [vmem:[#allocation10 + $0x154] sm:$0xf]
    %v766 = vld [vmem:[#allocation10 + $0x158] sm:$0xf]
    %v767 = vld [vmem:[#allocation10 + $0x15c] sm:$0xf]
    %v768 = vld [vmem:[#allocation10 + $0x160] sm:$0xf]
    %v769 = vld [vmem:[#allocation10 + $0x164] sm:$0xf]
    %v770 = vld [vmem:[#allocation10 + $0x168] sm:$0xf]
    %v771 = vld [vmem:[#allocation10 + $0x16c] sm:$0xf]
    %v772 = vld [vmem:[#allocation10 + $0x170] sm:$0xf]
    %v773 = vld [vmem:[#allocation10 + $0x174] sm:$0xf]
    %v774 = vld [vmem:[#allocation10 + $0x178] sm:$0xf]
    %v775 = vld [vmem:[#allocation10 + $0x17c] sm:$0xf]
    %v776 = vld [vmem:[%s6 + $0x1] sm:$0x1]
    %v778 = vlaneseq
    %v779 = vshrl.u32 %v778, 7
    %v780 = vsub.s32 0, %v779
    %v781 = vrot.slane %v776, %v780
    %v789 = vunpack.c.l.b16 %v674
    %v790 = vunpack.c.h.b16 %v674
    %v791 = vunpack.c.l.b16 %v675
    %v792 = vunpack.c.h.b16 %v675
    %v793 = vunpack.c.l.b16 %v676
    %v794 = vunpack.c.h.b16 %v676
    %v795 = vunpack.c.l.b16 %v677
    %v796 = vunpack.c.h.b16 %v677
    %v797 = vunpack.c.l.b16 %v678
    %v798 = vunpack.c.h.b16 %v678
    %v799 = vunpack.c.l.b16 %v679
    %v800 = vunpack.c.h.b16 %v679
    %v801 = vpack.c.b16 %v795, %v789
    %v802 = vpack.c.b16 %v796, %v790
    %v803 = vpack.c.b16 %v797, %v791
    %v804 = vpack.c.b16 %v798, %v792
    %v805 = vpack.c.b16 %v799, %v793
    %v806 = vpack.c.b16 %v800, %v794
    %v909 = vunpack.c.l.b16 %v680
    %v910 = vunpack.c.l.b16 %v681
    %v911 = vunpack.c.l.b16 %v682
    %v912 = vunpack.c.l.b16 %v683
    %v913 = vunpack.c.l.b16 %v684
    %v914 = vunpack.c.l.b16 %v685
    %v915 = vunpack.c.l.b16 %v686
    %v916 = vunpack.c.l.b16 %v687
    %v917 = vunpack.c.l.b16 %v688
    %v918 = vunpack.c.l.b16 %v689
    %v919 = vunpack.c.l.b16 %v690
    %v920 = vunpack.c.l.b16 %v691
    %v921 = vunpack.c.l.b16 %v692
    %v922 = vunpack.c.l.b16 %v693
    %v923 = vunpack.c.l.b16 %v694
    %v924 = vunpack.c.l.b16 %v695
    %v925 = vunpack.c.l.b16 %v696
    %v926 = vunpack.c.l.b16 %v697
    %v927 = vunpack.c.l.b16 %v698
    %v928 = vunpack.c.l.b16 %v699
    %v929 = vunpack.c.l.b16 %v700
    %v930 = vunpack.c.l.b16 %v701
    %v931 = vunpack.c.l.b16 %v702
    %v932 = vunpack.c.l.b16 %v703
    %v933 = vunpack.c.l.b16 %v704
    %v934 = vunpack.c.l.b16 %v705
    %v935 = vunpack.c.l.b16 %v706
    %v936 = vunpack.c.l.b16 %v707
    %v937 = vunpack.c.l.b16 %v708
    %v938 = vunpack.c.l.b16 %v709
    %v939 = vunpack.c.l.b16 %v710
    %v940 = vunpack.c.l.b16 %v711
    %v941 = vunpack.c.l.b16 %v712
    %v942 = vunpack.c.l.b16 %v713
    %v943 = vunpack.c.l.b16 %v714
    %v944 = vunpack.c.l.b16 %v715
    %v945 = vunpack.c.l.b16 %v716
    %v946 = vunpack.c.l.b16 %v717
    %v947 = vunpack.c.l.b16 %v718
    %v948 = vunpack.c.l.b16 %v719
    %v949 = vunpack.c.l.b16 %v720
    %v950 = vunpack.c.l.b16 %v721
    %v951 = vunpack.c.l.b16 %v722
    %v952 = vunpack.c.l.b16 %v723
    %v953 = vunpack.c.l.b16 %v724
    %v954 = vunpack.c.l.b16 %v725
    %v955 = vunpack.c.l.b16 %v726
    %v956 = vunpack.c.l.b16 %v727
    %v957 = vunpack.c.l.b16 %v728
    %v958 = vunpack.c.l.b16 %v729
    %v959 = vunpack.c.l.b16 %v730
    %v960 = vunpack.c.l.b16 %v731
    %v961 = vunpack.c.l.b16 %v732
    %v962 = vunpack.c.l.b16 %v733
    %v963 = vunpack.c.l.b16 %v734
    %v964 = vunpack.c.l.b16 %v735
    %v965 = vunpack.c.l.b16 %v736
    %v966 = vunpack.c.l.b16 %v737
    %v967 = vunpack.c.l.b16 %v738
    %v968 = vunpack.c.l.b16 %v739
    %v969 = vunpack.c.l.b16 %v740
    %v970 = vunpack.c.l.b16 %v741
    %v971 = vunpack.c.l.b16 %v742
    %v972 = vunpack.c.l.b16 %v743
    %v973 = vunpack.c.l.b16 %v744
    %v974 = vunpack.c.l.b16 %v745
    %v975 = vunpack.c.l.b16 %v746
    %v976 = vunpack.c.l.b16 %v747
    %v977 = vunpack.c.l.b16 %v748
    %v978 = vunpack.c.l.b16 %v749
    %v979 = vunpack.c.l.b16 %v750
    %v980 = vunpack.c.l.b16 %v751
    %v981 = vunpack.c.l.b16 %v752
    %v982 = vunpack.c.l.b16 %v753
    %v983 = vunpack.c.l.b16 %v754
    %v984 = vunpack.c.l.b16 %v755
    %v985 = vunpack.c.l.b16 %v756
    %v986 = vunpack.c.l.b16 %v757
    %v987 = vunpack.c.l.b16 %v758
    %v988 = vunpack.c.l.b16 %v759
    %v989 = vunpack.c.l.b16 %v760
    %v990 = vunpack.c.l.b16 %v761
    %v991 = vunpack.c.l.b16 %v762
    %v992 = vunpack.c.l.b16 %v763
    %v993 = vunpack.c.l.b16 %v764
    %v994 = vunpack.c.l.b16 %v765
    %v995 = vunpack.c.l.b16 %v766
    %v996 = vunpack.c.l.b16 %v767
    %v997 = vunpack.c.l.b16 %v768
    %v998 = vunpack.c.l.b16 %v769
    %v999 = vunpack.c.l.b16 %v770
    %v1000 = vunpack.c.l.b16 %v771
    %v1001 = vunpack.c.l.b16 %v772
    %v1002 = vunpack.c.l.b16 %v773
    %v1003 = vunpack.c.l.b16 %v774
    %v1004 = vunpack.c.l.b16 %v775
    %v1005 = vpack.c.b16 %v910, %v909
    %v1006 = vpack.c.b16 %v912, %v911
    %v1007 = vpack.c.b16 %v914, %v913
    %v1008 = vpack.c.b16 %v916, %v915
    %v1009 = vpack.c.b16 %v918, %v917
    %v1010 = vpack.c.b16 %v920, %v919
    %v1011 = vpack.c.b16 %v922, %v921
    %v1012 = vpack.c.b16 %v924, %v923
    %v1013 = vpack.c.b16 %v926, %v925
    %v1014 = vpack.c.b16 %v928, %v927
    %v1015 = vpack.c.b16 %v930, %v929
    %v1016 = vpack.c.b16 %v932, %v931
    %v1017 = vpack.c.b16 %v934, %v933
    %v1018 = vpack.c.b16 %v936, %v935
    %v1019 = vpack.c.b16 %v938, %v937
    %v1020 = vpack.c.b16 %v940, %v939
    %v1021 = vpack.c.b16 %v942, %v941
    %v1022 = vpack.c.b16 %v944, %v943
    %v1023 = vpack.c.b16 %v946, %v945
    %v1024 = vpack.c.b16 %v948, %v947
    %v1025 = vpack.c.b16 %v950, %v949
    %v1026 = vpack.c.b16 %v952, %v951
    %v1027 = vpack.c.b16 %v954, %v953
    %v1028 = vpack.c.b16 %v956, %v955
    %v1029 = vpack.c.b16 %v958, %v957
    %v1030 = vpack.c.b16 %v960, %v959
    %v1031 = vpack.c.b16 %v962, %v961
    %v1032 = vpack.c.b16 %v964, %v963
    %v1033 = vpack.c.b16 %v966, %v965
    %v1034 = vpack.c.b16 %v968, %v967
    %v1035 = vpack.c.b16 %v970, %v969
    %v1036 = vpack.c.b16 %v972, %v971
    %v1037 = vpack.c.b16 %v974, %v973
    %v1038 = vpack.c.b16 %v976, %v975
    %v1039 = vpack.c.b16 %v978, %v977
    %v1040 = vpack.c.b16 %v980, %v979
    %v1041 = vpack.c.b16 %v982, %v981
    %v1042 = vpack.c.b16 %v984, %v983
    %v1043 = vpack.c.b16 %v986, %v985
    %v1044 = vpack.c.b16 %v988, %v987
    %v1045 = vpack.c.b16 %v990, %v989
    %v1046 = vpack.c.b16 %v992, %v991
    %v1047 = vpack.c.b16 %v994, %v993
    %v1048 = vpack.c.b16 %v996, %v995
    %v1049 = vpack.c.b16 %v998, %v997
    %v1050 = vpack.c.b16 %v1000, %v999
    %v1051 = vpack.c.b16 %v1002, %v1001
    %v1052 = vpack.c.b16 %v1004, %v1003
    %1101 = vmatprep.subr.bf16.mxu0 0
    %1102 = vmatpush1.bf16.msra.mxu0 %v1005
    %1103 = vmatprep.subr.bf16.mxu0 0
    %1104 = vmatpush1.bf16.msra.mxu0 %v1006
    %1105 = vmatprep.subr.bf16.mxu0 0
    %1106 = vmatpush1.bf16.msra.mxu0 %v1007
    %1107 = vmatprep.subr.bf16.mxu0 0
    %1108 = vmatpush1.bf16.msra.mxu0 %v1008
    %1109 = vmatprep.subr.bf16.mxu0 0
    %1110 = vmatpush1.bf16.msra.mxu0 %v1009
    %1111 = vmatprep.subr.bf16.mxu0 0
    %1112 = vmatpush1.bf16.msra.mxu0 %v1010
    %1113 = vmatprep.subr.bf16.mxu0 0
    %1114 = vmatpush1.bf16.msra.mxu0 %v1011
    %1115 = vmatprep.subr.bf16.mxu0 0
    %1116 = vmatpush1.bf16.msra.mxu0 %v1012
    %1117 = vmatprep.subr.bf16.mxu0 0
    %1118 = vmatpush1.bf16.msra.mxu0 %v1013
    %1119 = vmatprep.subr.bf16.mxu0 0
    %1120 = vmatpush1.bf16.msra.mxu0 %v1014
    %1121 = vmatprep.subr.bf16.mxu0 0
    %1122 = vmatpush1.bf16.msra.mxu0 %v1015
    %1123 = vmatprep.subr.bf16.mxu0 0
    %1124 = vmatpush1.bf16.msra.mxu0 %v1016
    %1125 = vmatprep.subr.bf16.mxu0 0
    %1126 = vmatpush1.bf16.msra.mxu0 %v1017
    %1127 = vmatprep.subr.bf16.mxu0 0
    %1128 = vmatpush1.bf16.msra.mxu0 %v1018
    %1129 = vmatprep.subr.bf16.mxu0 0
    %1130 = vmatpush1.bf16.msra.mxu0 %v1019
    %1131 = vmatprep.subr.bf16.mxu0 0
    %1132 = vmatpush1.bf16.msra.mxu0 %v1020
    %1133 = vmatprep.mubr.bf16.mxu0 %v802
    %1134 = vmatmul.mubr.bf16.gmra.mrb[0].mxu0 %v801
    %v1135 = vpop.f32.mrb[0].mxu0
    %v1136 = vadd.f32 %v781, %v1135
    %v1137 = vpop.f32.mrb[0].mxu0
    %v1138 = vpop.f32.mrb[0].mxu0
    %v1139 = vadd.f32 %v781, %v1138
    %v1140 = vpop.f32.mrb[0].mxu0
    %1141 = vdwg.mxu0
    %1142 = vmatprep.subr.bf16.mxu0 0
    %1143 = vmatpush1.bf16.msra.mxu0 %v1021
    %1144 = vmatprep.subr.bf16.mxu0 0
    %1145 = vmatpush1.bf16.msra.mxu0 %v1022
    %1146 = vmatprep.subr.bf16.mxu0 0
    %1147 = vmatpush1.bf16.msra.mxu0 %v1023
    %1148 = vmatprep.subr.bf16.mxu0 0
    %1149 = vmatpush1.bf16.msra.mxu0 %v1024
    %1150 = vmatprep.subr.bf16.mxu0 0
    %1151 = vmatpush1.bf16.msra.mxu0 %v1025
    %1152 = vmatprep.subr.bf16.mxu0 0
    %1153 = vmatpush1.bf16.msra.mxu0 %v1026
    %1154 = vmatprep.subr.bf16.mxu0 0
    %1155 = vmatpush1.bf16.msra.mxu0 %v1027
    %1156 = vmatprep.subr.bf16.mxu0 0
    %1157 = vmatpush1.bf16.msra.mxu0 %v1028
    %1158 = vmatprep.subr.bf16.mxu0 0
    %1159 = vmatpush1.bf16.msra.mxu0 %v1029
    %1160 = vmatprep.subr.bf16.mxu0 0
    %1161 = vmatpush1.bf16.msra.mxu0 %v1030
    %1162 = vmatprep.subr.bf16.mxu0 0
    %1163 = vmatpush1.bf16.msra.mxu0 %v1031
    %1164 = vmatprep.subr.bf16.mxu0 0
    %1165 = vmatpush1.bf16.msra.mxu0 %v1032
    %1166 = vmatprep.subr.bf16.mxu0 0
    %1167 = vmatpush1.bf16.msra.mxu0 %v1033
    %1168 = vmatprep.subr.bf16.mxu0 0
    %1169 = vmatpush1.bf16.msra.mxu0 %v1034
    %1170 = vmatprep.subr.bf16.mxu0 0
    %1171 = vmatpush1.bf16.msra.mxu0 %v1035
    %1172 = vmatprep.subr.bf16.mxu0 0
    %1173 = vmatpush1.bf16.msra.mxu0 %v1036
    %1174 = vmatprep.mubr.bf16.mxu0 %v804
    %1175 = vmatmul.mubr.bf16.gmra.mrb[0].mxu0 %v803
    %v1176 = vpop.f32.mrb[0].mxu0
    %v1177 = vadd.f32 %v1136, %v1176
    %v1178 = vpop.f32.mrb[0].mxu0
    %v1179 = vpop.f32.mrb[0].mxu0
    %v1180 = vadd.f32 %v1139, %v1179
    %v1181 = vpop.f32.mrb[0].mxu0
    %1182 = vdwg.mxu0
    %1183 = vmatprep.subr.bf16.mxu0 0
    %1184 = vmatpush1.bf16.msra.mxu0 %v1037
    %1185 = vmatprep.subr.bf16.mxu0 0
    %1186 = vmatpush1.bf16.msra.mxu0 %v1038
    %1187 = vmatprep.subr.bf16.mxu0 0
    %1188 = vmatpush1.bf16.msra.mxu0 %v1039
    %1189 = vmatprep.subr.bf16.mxu0 0
    %1190 = vmatpush1.bf16.msra.mxu0 %v1040
    %1191 = vmatprep.subr.bf16.mxu0 0
    %1192 = vmatpush1.bf16.msra.mxu0 %v1041
    %1193 = vmatprep.subr.bf16.mxu0 0
    %1194 = vmatpush1.bf16.msra.mxu0 %v1042
    %1195 = vmatprep.subr.bf16.mxu0 0
    %1196 = vmatpush1.bf16.msra.mxu0 %v1043
    %1197 = vmatprep.subr.bf16.mxu0 0
    %1198 = vmatpush1.bf16.msra.mxu0 %v1044
    %1199 = vmatprep.subr.bf16.mxu0 0
    %1200 = vmatpush1.bf16.msra.mxu0 %v1045
    %1201 = vmatprep.subr.bf16.mxu0 0
    %1202 = vmatpush1.bf16.msra.mxu0 %v1046
    %1203 = vmatprep.subr.bf16.mxu0 0
    %1204 = vmatpush1.bf16.msra.mxu0 %v1047
    %1205 = vmatprep.subr.bf16.mxu0 0
    %1206 = vmatpush1.bf16.msra.mxu0 %v1048
    %1207 = vmatprep.subr.bf16.mxu0 0
    %1208 = vmatpush1.bf16.msra.mxu0 %v1049
    %1209 = vmatprep.subr.bf16.mxu0 0
    %1210 = vmatpush1.bf16.msra.mxu0 %v1050
    %1211 = vmatprep.subr.bf16.mxu0 0
    %1212 = vmatpush1.bf16.msra.mxu0 %v1051
    %1213 = vmatprep.subr.bf16.mxu0 0
    %1214 = vmatpush1.bf16.msra.mxu0 %v1052
    %1215 = vmatprep.mubr.bf16.mxu0 %v806
    %1216 = vmatmul.mubr.bf16.gmra.mrb[0].mxu0 %v805
    %v1217 = vpop.f32.mrb[0].mxu0
    %v1218 = vadd.f32 %v1177, %v1217
    %v1219 = vpop.f32.mrb[0].mxu0
    %v1220 = vpop.f32.mrb[0].mxu0
    %v1221 = vadd.f32 %v1180, %v1220
    %v1222 = vpop.f32.mrb[0].mxu0
    %1223 = vdwg.mxu0
    %v1224 = vmul.f32 %v1218, %v1218
    %v1225 = vmul.f32 %v1221, %v1221
    %1226 = vadd.xlane.f32.xlu0 %v1224
    %v1227 = vpop.xlane.xlu0 %1226
    %1228 = vadd.xlane.f32.xlu0 %v1225
    %v1229 = vpop.xlane.xlu0 %1228
    %v1230 = vmax.f32 %v1227, 1e-24
    %v1231 = vmax.f32 %v1229, 1e-24
    %v1232 = vrsqrt.pop %v1230
    %v1233 = vrsqrt.pop %v1231
    %v1234 = vmul.f32 %v1218, %v1232
    %v1235 = vmul.f32 %v1221, %v1233
    %1236 = vst [vmem:[#allocation13 + $0x8] sm:$0xff] %v1234
    %1237 = vst [vmem:[#allocation13 + $0x20] sm:$0xff] %v1235
    %v1238 = vld [vmem:[#allocation7] sm:$0xff]
    %v1239 = vld [vmem:[#allocation7 + $0x8] sm:$0xff]
    %v1240 = vld [vmem:[#allocation11] sm:$0xf]
    %v1241 = vld [vmem:[#allocation11 + $0x4] sm:$0xf]
    %v1242 = vld [vmem:[#allocation11 + $0x8] sm:$0xf]
    %v1243 = vld [vmem:[#allocation11 + $0xc] sm:$0xf]
    %v1244 = vld [vmem:[#allocation11 + $0x10] sm:$0xf]
    %v1245 = vld [vmem:[#allocation11 + $0x14] sm:$0xf]
    %v1246 = vld [vmem:[#allocation11 + $0x18] sm:$0xf]
    %v1247 = vld [vmem:[#allocation11 + $0x1c] sm:$0xf]
    %v1248 = vld [vmem:[#allocation11 + $0x20] sm:$0xf]
    %v1249 = vld [vmem:[#allocation11 + $0x24] sm:$0xf]
    %v1250 = vld [vmem:[#allocation11 + $0x28] sm:$0xf]
    %v1251 = vld [vmem:[#allocation11 + $0x2c] sm:$0xf]
    %v1252 = vld [vmem:[#allocation11 + $0x30] sm:$0xf]
    %v1253 = vld [vmem:[#allocation11 + $0x34] sm:$0xf]
    %v1254 = vld [vmem:[#allocation11 + $0x38] sm:$0xf]
    %v1255 = vld [vmem:[#allocation11 + $0x3c] sm:$0xf]
    %v1256 = vld [vmem:[#allocation11 + $0x40] sm:$0xf]
    %v1257 = vld [vmem:[#allocation11 + $0x44] sm:$0xf]
    %v1258 = vld [vmem:[#allocation11 + $0x48] sm:$0xf]
    %v1259 = vld [vmem:[#allocation11 + $0x4c] sm:$0xf]
    %v1260 = vld [vmem:[#allocation11 + $0x50] sm:$0xf]
    %v1261 = vld [vmem:[#allocation11 + $0x54] sm:$0xf]
    %v1262 = vld [vmem:[#allocation11 + $0x58] sm:$0xf]
    %v1263 = vld [vmem:[#allocation11 + $0x5c] sm:$0xf]
    %v1264 = vld [vmem:[#allocation11 + $0x60] sm:$0xf]
    %v1265 = vld [vmem:[#allocation11 + $0x64] sm:$0xf]
    %v1266 = vld [vmem:[#allocation11 + $0x68] sm:$0xf]
    %v1267 = vld [vmem:[#allocation11 + $0x6c] sm:$0xf]
    %v1268 = vld [vmem:[#allocation11 + $0x70] sm:$0xf]
    %v1269 = vld [vmem:[#allocation11 + $0x74] sm:$0xf]
    %v1270 = vld [vmem:[#allocation11 + $0x78] sm:$0xf]
    %v1271 = vld [vmem:[#allocation11 + $0x7c] sm:$0xf]
    %v1272 = vld [vmem:[%s6 + $0x2] sm:$0x1]
    %v1274 = vlaneseq
    %v1275 = vshrl.u32 %v1274, 7
    %v1276 = vsub.s32 0, %v1275
    %v1277 = vrot.slane %v1272, %v1276
    %v1281 = vunpack.c.l.b16 %v1238
    %v1282 = vunpack.c.h.b16 %v1238
    %v1283 = vunpack.c.l.b16 %v1239
    %v1284 = vunpack.c.h.b16 %v1239
    %v1285 = vpack.c.b16 %v1283, %v1281
    %v1286 = vpack.c.b16 %v1284, %v1282
    %v1321 = vunpack.c.l.b16 %v1240
    %v1322 = vunpack.c.l.b16 %v1241
    %v1323 = vunpack.c.l.b16 %v1242
    %v1324 = vunpack.c.l.b16 %v1243
    %v1325 = vunpack.c.l.b16 %v1244
    %v1326 = vunpack.c.l.b16 %v1245
    %v1327 = vunpack.c.l.b16 %v1246
    %v1328 = vunpack.c.l.b16 %v1247
    %v1329 = vunpack.c.l.b16 %v1248
    %v1330 = vunpack.c.l.b16 %v1249
    %v1331 = vunpack.c.l.b16 %v1250
    %v1332 = vunpack.c.l.b16 %v1251
    %v1333 = vunpack.c.l.b16 %v1252
    %v1334 = vunpack.c.l.b16 %v1253
    %v1335 = vunpack.c.l.b16 %v1254
    %v1336 = vunpack.c.l.b16 %v1255
    %v1337 = vunpack.c.l.b16 %v1256
    %v1338 = vunpack.c.l.b16 %v1257
    %v1339 = vunpack.c.l.b16 %v1258
    %v1340 = vunpack.c.l.b16 %v1259
    %v1341 = vunpack.c.l.b16 %v1260
    %v1342 = vunpack.c.l.b16 %v1261
    %v1343 = vunpack.c.l.b16 %v1262
    %v1344 = vunpack.c.l.b16 %v1263
    %v1345 = vunpack.c.l.b16 %v1264
    %v1346 = vunpack.c.l.b16 %v1265
    %v1347 = vunpack.c.l.b16 %v1266
    %v1348 = vunpack.c.l.b16 %v1267
    %v1349 = vunpack.c.l.b16 %v1268
    %v1350 = vunpack.c.l.b16 %v1269
    %v1351 = vunpack.c.l.b16 %v1270
    %v1352 = vunpack.c.l.b16 %v1271
    %v1353 = vpack.c.b16 %v1322, %v1321
    %v1354 = vpack.c.b16 %v1324, %v1323
    %v1355 = vpack.c.b16 %v1326, %v1325
    %v1356 = vpack.c.b16 %v1328, %v1327
    %v1357 = vpack.c.b16 %v1330, %v1329
    %v1358 = vpack.c.b16 %v1332, %v1331
    %v1359 = vpack.c.b16 %v1334, %v1333
    %v1360 = vpack.c.b16 %v1336, %v1335
    %v1361 = vpack.c.b16 %v1338, %v1337
    %v1362 = vpack.c.b16 %v1340, %v1339
    %v1363 = vpack.c.b16 %v1342, %v1341
    %v1364 = vpack.c.b16 %v1344, %v1343
    %v1365 = vpack.c.b16 %v1346, %v1345
    %v1366 = vpack.c.b16 %v1348, %v1347
    %v1367 = vpack.c.b16 %v1350, %v1349
    %v1368 = vpack.c.b16 %v1352, %v1351
    %1385 = vmatprep.subr.bf16.mxu0 0
    %1386 = vmatpush1.bf16.msra.mxu0 %v1353
    %1387 = vmatprep.subr.bf16.mxu0 0
    %1388 = vmatpush1.bf16.msra.mxu0 %v1354
    %1389 = vmatprep.subr.bf16.mxu0 0
    %1390 = vmatpush1.bf16.msra.mxu0 %v1355
    %1391 = vmatprep.subr.bf16.mxu0 0
    %1392 = vmatpush1.bf16.msra.mxu0 %v1356
    %1393 = vmatprep.subr.bf16.mxu0 0
    %1394 = vmatpush1.bf16.msra.mxu0 %v1357
    %1395 = vmatprep.subr.bf16.mxu0 0
    %1396 = vmatpush1.bf16.msra.mxu0 %v1358
    %1397 = vmatprep.subr.bf16.mxu0 0
    %1398 = vmatpush1.bf16.msra.mxu0 %v1359
    %1399 = vmatprep.subr.bf16.mxu0 0
    %1400 = vmatpush1.bf16.msra.mxu0 %v1360
    %1401 = vmatprep.subr.bf16.mxu0 0
    %1402 = vmatpush1.bf16.msra.mxu0 %v1361
    %1403 = vmatprep.subr.bf16.mxu0 0
    %1404 = vmatpush1.bf16.msra.mxu0 %v1362
    %1405 = vmatprep.subr.bf16.mxu0 0
    %1406 = vmatpush1.bf16.msra.mxu0 %v1363
    %1407 = vmatprep.subr.bf16.mxu0 0
    %1408 = vmatpush1.bf16.msra.mxu0 %v1364
    %1409 = vmatprep.subr.bf16.mxu0 0
    %1410 = vmatpush1.bf16.msra.mxu0 %v1365
    %1411 = vmatprep.subr.bf16.mxu0 0
    %1412 = vmatpush1.bf16.msra.mxu0 %v1366
    %1413 = vmatprep.subr.bf16.mxu0 0
    %1414 = vmatpush1.bf16.msra.mxu0 %v1367
    %1415 = vmatprep.subr.bf16.mxu0 0
    %1416 = vmatpush1.bf16.msra.mxu0 %v1368
    %1417 = vmatprep.mubr.bf16.mxu0 %v1286
    %1418 = vmatmul.mubr.bf16.gmra.mrb[0].mxu0 %v1285
    %v1419 = vpop.f32.mrb[0].mxu0
    %v1420 = vadd.f32 %v1277, %v1419
    %v1421 = vpop.f32.mrb[0].mxu0
    %v1422 = vpop.f32.mrb[0].mxu0
    %v1423 = vadd.f32 %v1277, %v1422
    %v1424 = vpop.f32.mrb[0].mxu0
    %1425 = vdwg.mxu0
    %v1426 = vmul.f32 %v1420, %v1420
    %v1427 = vmul.f32 %v1423, %v1423
    %1428 = vadd.xlane.f32.xlu0 %v1426
    %v1429 = vpop.xlane.xlu0 %1428
    %1430 = vadd.xlane.f32.xlu0 %v1427
    %v1431 = vpop.xlane.xlu0 %1430
    %v1432 = vmax.f32 %v1429, 1e-24
    %v1433 = vmax.f32 %v1431, 1e-24
    %v1434 = vrsqrt.pop %v1432
    %v1435 = vrsqrt.pop %v1433
    %v1436 = vmul.f32 %v1420, %v1434
    %v1437 = vmul.f32 %v1423, %v1435
    %1438 = vst [vmem:[#allocation13 + $0x10] sm:$0xff] %v1436
    %1439 = vst [vmem:[#allocation13 + $0x28] sm:$0xff] %v1437
    // Predicated region
    $region54: #{tpu_custom_call.1} parent=1 // pred_check
      _
    $region55: #{tpu_custom_call.1} parent=1 // pred_check_branch
      %1441 = sbr.rel (0) target = $region57
    $region56: #{tpu_custom_call.1} parent=1 // pred_region
      %s1443 = ssub.s32 768, 768
      %1444 = vsyncadd [#allocation4], %s1443
      %s1445 = sshll.u32 [#allocation13], 4
      %s1446 = int_to_ptr.vmem [resolvable:$true] %s1445
      %1451 = dma.vmem_to_hbm [thread:$0]  %s1446, 768, %s7, [#allocation4], 384, 384, 24
    $region57: #{tpu_custom_call.1} parent=1 // pred_fallthru
      _
    // Predicated region
    $region58: #{tpu_custom_call.1} parent=1 // pred_check
      _
    $region59: #{tpu_custom_call.1} parent=1 // pred_check_branch
      %1453 = sbr.rel (0) target = $region61
    $region60: #{tpu_custom_call.1} parent=1 // pred_region
      %1454 = dma.done [#allocation4], 768
    $region61: #{tpu_custom_call.1} parent=1 // pred_fallthru
      _
    %1455 = vsyncpa [#allocation3], 1
    %1456 = vsyncpa [#allocation6], 1
    %1457 = vsyncpa [#allocation9], 1
    %1458 = vsyncpa [#allocation12], 1
    %1459 = vsyncpa [#allocation4], 1

</llo_original>
